<compile_context>
chip_gen: v7x
topology: tpu7x:2x2x1
jax: 0.10.0
libtpu: 0.0.40
codegen_flags: <defaults>
</compile_context>

<pallas_src>
import jax
import jax.numpy as jnp
from jax.experimental import pallas as pl
from jax.experimental.pallas import tpu as pltpu

_LANE = 128
_SMALL_K = 8            # contractions at/below this width use the VPU, not the MXU
_DEFAULT_TILE_N = 4096  # batch (lane-axis) tile; multiple of 128
_MIN_SPLIT = 2048       # split a single-tile batch in two (megacore) above this


def _round_up(v, m):
    return (v + m - 1) // m * m


def _fused_mlp_kernel(x_ref, *refs):
    """Whole MLP on one (:, tile_n) slab of collocation points.

    Feature-major layout: x_ref is (in_features, tn).  refs = (w1, b1, ...,
    wL, bL, out_ref) with weights in PyTorch layout (out, in) and biases
    (out, 1).  Each layer computes y = W @ h + b; tanh on all but the last.
    """
    out_ref = refs[-1]
    wb = refs[:-1]
    num_layers = len(wb) // 2

    h = x_ref[...].astype(jnp.float32)            # (f, tn)
    for li in range(num_layers):
        w_ref = wb[2 * li]                        # (out, in)
        b_ref = wb[2 * li + 1]                    # (out, 1)
        k_in = w_ref.shape[1]
        if k_in <= _SMALL_K:
            # Tiny contraction (K=2 input layer): VPU outer-product FMAs.
            # h[kk:kk+1, :] is a (1, tn) row -> sublane broadcast (near-free);
            # the (out, 1) weight column lane-broadcast is tiny.
            y = w_ref[:, 0:1] * h[0:1, :]
            for kk in range(1, k_in):
                y = y + w_ref[:, kk:kk + 1] * h[kk:kk + 1, :]
        else:
            y = jnp.dot(w_ref[...], h, preferred_element_type=jnp.float32)
        y = y + b_ref[...]
        if li < num_layers - 1:
            y = jnp.tanh(y)
        h = y
    out_ref[...] = h.astype(out_ref.dtype)


def _pick_tiling(n, tile_n):
    """Pick a lane-axis tile (multiple of 128) and the padded batch size."""
    tile_n = _round_up(max(tile_n, _LANE), _LANE)
    n_min = _round_up(n, _LANE)
    if n_min <= tile_n:
        if n_min >= _MIN_SPLIT:
            # Big enough: split into 2 grid steps so a v7x megacore (2 TCs)
            # has work on both cores; each half still amortizes the ~0.35us
            # per-step pipeline overhead.
            tn = _round_up((n_min + 1) // 2, _LANE)
        else:
            tn = n_min
    else:
        tn = tile_n
    n_pad = _round_up(n, tn)
    return tn, n_pad


def pinn_forward(params, x, *, tile_n=_DEFAULT_TILE_N):
    """Fused-Pallas forward pass equivalent to the PyTorch PINN module.

    params: list of (weight, bias) in PyTorch nn.Linear layout:
            weight (out_features, in_features), bias (out_features,).
    x:      (n, in_features) collocation points.
    Returns (n, out_features).
    """
    assert x.ndim == 2
    n, f = x.shape
    out_dim = int(params[-1][0].shape[0])

    tn, n_pad = _pick_tiling(n, tile_n)

    # Feature-major: batch lives on the lane axis; zero-pad batch to the tile.
    # Padded columns produce finite garbage that is sliced off below.
    x_t = x.T
    if n_pad != n:
        x_t = jnp.pad(x_t, ((0, 0), (0, n_pad - n)))

    operands = [x_t]
    in_specs = [pl.BlockSpec((f, tn), lambda i: (0, i))]
    for w, b in params:
        w32 = jnp.asarray(w, jnp.float32)
        b32 = jnp.asarray(b, jnp.float32).reshape(-1, 1)   # (out, 1)
        # Constant index_map -> weights/biases are DMA'd once and stay
        # VMEM-resident across all grid steps.
        in_specs.append(pl.BlockSpec(w32.shape, lambda i: (0, 0)))
        in_specs.append(pl.BlockSpec(b32.shape, lambda i: (0, 0)))
        operands += [w32, b32]

    flops = 2 * n_pad * sum(int(w.shape[0]) * int(w.shape[1]) for w, _ in params)
    transcendentals = n_pad * sum(int(w.shape[0]) for w, _ in params[:-1])
    bytes_accessed = 4 * (f * n_pad
                          + sum(int(w.size) + int(b.size) for w, b in params)
                          + out_dim * n_pad)

    out_t = pl.pallas_call(
        _fused_mlp_kernel,
        out_shape=jax.ShapeDtypeStruct((out_dim, n_pad), x.dtype),
        grid=(n_pad // tn,),
        in_specs=in_specs,
        out_specs=pl.BlockSpec((out_dim, tn), lambda i: (0, i)),
        compiler_params=pltpu.CompilerParams(
            dimension_semantics=("parallel",)),
        cost_estimate=pl.CostEstimate(
            flops=flops,
            transcendentals=transcendentals,
            bytes_accessed=bytes_accessed),
    )(*operands)

    # (out_dim, n_pad) -> (n, out_dim).  Lane-dense store inside the kernel;
    # this transpose/slice on the tiny output is plain XLA.
    return out_t[:, :n].T


def init_pinn_params(layers, key):
    """Deterministic params with exact nn.Linear shapes: W (out,in), b (out,)."""
    params = []
    for i in range(len(layers) - 1):
        fan_in, fan_out = layers[i], layers[i + 1]
        key, kw, kb = jax.random.split(key, 3)
        bound = 1.0 / jnp.sqrt(jnp.float32(fan_in))
        w = jax.random.uniform(kw, (fan_out, fan_in), jnp.float32, -bound, bound)
        b = jax.random.uniform(kb, (fan_out,), jnp.float32, -bound, bound)
        params.append((w, b))
    return params


def pinn_forward_ref(params, x):
    """Pure-JAX reference (mirrors the PyTorch module)."""
    h = x
    for w, b in params[:-1]:
        h = jnp.tanh(h @ w.T + b)
    w, b = params[-1]
    return h @ w.T + b


if __name__ == "__main__":
    # Typical PINN architecture: 2 inputs (t, x) -> hidden -> hidden -> 1 output.
    layers = [2, 32, 32, 1]

    key = jax.random.PRNGKey(0)
    params = init_pinn_params(layers, key)

    # Small-shape check (single 128-wide tile).
    key, kx = jax.random.split(key)
    x_small = jax.random.normal(kx, (8, layers[0]), jnp.float32)
    out_small = jax.block_until_ready(pinn_forward(params, x_small))
    ref_small = pinn_forward_ref(params, x_small)
    assert out_small.shape == (8, layers[-1])
    assert jnp.allclose(out_small, ref_small, atol=1e-5, rtol=1e-5)

    # Gridded ("parallel") multi-tile path with batch padding (n=6000 -> two
    # 4096-column tiles, padded rows sliced off).
    key, kx2 = jax.random.split(key)
    x_big = jax.random.normal(kx2, (6000, layers[0]), jnp.float32)
    out_big = jax.block_until_ready(pinn_forward(params, x_big))
    ref_big = pinn_forward_ref(params, x_big)
    assert out_big.shape == (6000, layers[-1])
    assert jnp.allclose(out_big, ref_big, atol=1e-4, rtol=1e-4)

    print("KERNEL_OK")
</pallas_src>

<mosaic_0001>
module attributes {stable_mosaic.version = 11 : i64} {
  func.func @_fused_mlp_kernel(%arg0: i32, %arg1: memref<2x128xf32, #tpu.memory_space<vmem>>, %arg2: memref<32x2xf32, #tpu.memory_space<vmem>>, %arg3: memref<32x1xf32, #tpu.memory_space<vmem>>, %arg4: memref<32x32xf32, #tpu.memory_space<vmem>>, %arg5: memref<32x1xf32, #tpu.memory_space<vmem>>, %arg6: memref<1x32xf32, #tpu.memory_space<vmem>>, %arg7: memref<1x1xf32, #tpu.memory_space<vmem>>, %arg8: memref<1x128xf32, #tpu.memory_space<vmem>>) attributes {dimension_semantics = [#tpu.dimension_semantics<parallel>], iteration_bounds = array<i64: 1>, scalar_prefetch = 0 : i64, scratch_operands = 0 : i64, tpu.core_type = #tpu.core_type<tc>, window_params = [{transform_indices = @transform_0, window_bounds = array<i64: 2, 128>}, {pipeline_mode = #tpu.pipeline_mode<synchronous>, transform_indices = @transform_1, window_bounds = array<i64: 32, 2>}, {pipeline_mode = #tpu.pipeline_mode<synchronous>, transform_indices = @transform_2, window_bounds = array<i64: 32, 1>}, {pipeline_mode = #tpu.pipeline_mode<synchronous>, transform_indices = @transform_3, window_bounds = array<i64: 32, 32>}, {pipeline_mode = #tpu.pipeline_mode<synchronous>, transform_indices = @transform_4, window_bounds = array<i64: 32, 1>}, {pipeline_mode = #tpu.pipeline_mode<synchronous>, transform_indices = @transform_5, window_bounds = array<i64: 1, 32>}, {pipeline_mode = #tpu.pipeline_mode<synchronous>, transform_indices = @transform_6, window_bounds = array<i64: 1, 1>}, {transform_indices = @transform_7, window_bounds = array<i64: 1, 128>}]} {
    %c0 = arith.constant 0 : index
    %c0_0 = arith.constant 0 : index
    %0 = vector.load %arg1[%c0, %c0_0] : memref<2x128xf32, #tpu.memory_space<vmem>>, vector<2x128xf32>
    %c0_1 = arith.constant 0 : index
    %c0_2 = arith.constant 0 : index
    %1 = vector.load %arg2[%c0_1, %c0_2] : memref<32x2xf32, #tpu.memory_space<vmem>>, vector<32x1xf32>
    %2 = vector.extract_strided_slice %0 {offsets = [0, 0], sizes = [1, 128], strides = [1, 1]} : vector<2x128xf32> to vector<1x128xf32>
    %3 = vector.broadcast %1 : vector<32x1xf32> to vector<32x128xf32>
    %4 = vector.broadcast %2 : vector<1x128xf32> to vector<32x128xf32>
    %5 = arith.mulf %3, %4 : vector<32x128xf32>
    %c0_3 = arith.constant 0 : index
    %c1 = arith.constant 1 : index
    %6 = vector.load %arg2[%c0_3, %c1] : memref<32x2xf32, #tpu.memory_space<vmem>>, vector<32x1xf32>
    %7 = vector.extract_strided_slice %0 {offsets = [1, 0], sizes = [1, 128], strides = [1, 1]} : vector<2x128xf32> to vector<1x128xf32>
    %8 = vector.broadcast %6 : vector<32x1xf32> to vector<32x128xf32>
    %9 = vector.broadcast %7 : vector<1x128xf32> to vector<32x128xf32>
    %10 = arith.mulf %8, %9 : vector<32x128xf32>
    %11 = arith.addf %5, %10 : vector<32x128xf32>
    %c0_4 = arith.constant 0 : index
    %c0_5 = arith.constant 0 : index
    %12 = vector.load %arg3[%c0_4, %c0_5] : memref<32x1xf32, #tpu.memory_space<vmem>>, vector<32x1xf32>
    %13 = vector.broadcast %12 : vector<32x1xf32> to vector<32x128xf32>
    %14 = arith.addf %11, %13 : vector<32x128xf32>
    %15 = math.tanh %14 : vector<32x128xf32>
    %c0_6 = arith.constant 0 : index
    %c0_7 = arith.constant 0 : index
    %16 = vector.load %arg4[%c0_6, %c0_7] : memref<32x32xf32, #tpu.memory_space<vmem>>, vector<32x32xf32>
    %cst = arith.constant dense<0.000000e+00> : vector<32x128xf32>
    %17 = tpu.matmul %16, %15, %cst {dimension_numbers = #tpu.dot_dimension_numbers<[1], [0], [0], [1], [0, 0, 1, 1], [], []>} : vector<32x32xf32>, vector<32x128xf32>, vector<32x128xf32> -> vector<32x128xf32>
    %c0_8 = arith.constant 0 : index
    %c0_9 = arith.constant 0 : index
    %18 = vector.load %arg5[%c0_8, %c0_9] : memref<32x1xf32, #tpu.memory_space<vmem>>, vector<32x1xf32>
    %19 = vector.broadcast %18 : vector<32x1xf32> to vector<32x128xf32>
    %20 = arith.addf %17, %19 : vector<32x128xf32>
    %21 = math.tanh %20 : vector<32x128xf32>
    %c0_10 = arith.constant 0 : index
    %c0_11 = arith.constant 0 : index
    %22 = vector.load %arg6[%c0_10, %c0_11] : memref<1x32xf32, #tpu.memory_space<vmem>>, vector<1x32xf32>
    %cst_12 = arith.constant dense<0.000000e+00> : vector<1x128xf32>
    %23 = tpu.matmul %22, %21, %cst_12 {dimension_numbers = #tpu.dot_dimension_numbers<[1], [0], [0], [1], [0, 0, 1, 1], [], []>} : vector<1x32xf32>, vector<32x128xf32>, vector<1x128xf32> -> vector<1x128xf32>
    %c0_13 = arith.constant 0 : index
    %c0_14 = arith.constant 0 : index
    %24 = vector.load %arg7[%c0_13, %c0_14] : memref<1x1xf32, #tpu.memory_space<vmem>>, vector<1x1xf32>
    %25 = vector.broadcast %24 : vector<1x1xf32> to vector<1x128xf32>
    %26 = arith.addf %23, %25 : vector<1x128xf32>
    %c0_15 = arith.constant 0 : index
    %c0_16 = arith.constant 0 : index
    %27 = vector.load %arg8[%c0_15, %c0_16] : memref<1x128xf32, #tpu.memory_space<vmem>>, vector<1x128xf32>
    tpu.vector_store %arg8[%c0_15, %c0_16], %26 {strides = array<i32>} : memref<1x128xf32, #tpu.memory_space<vmem>>, vector<1x128xf32>,
    return
  }
  func.func @transform_0(%arg0: i32) -> (i32, i32) {
    %c0_i32 = arith.constant 0 : i32
    %c0_i32_0 = arith.constant 0 : i32
    return %c0_i32, %arg0 : i32, i32
  }
  func.func @transform_1(%arg0: i32) -> (i32, i32) {
    %c0_i32 = arith.constant 0 : i32
    %c0_i32_0 = arith.constant 0 : i32
    %c0_i32_1 = arith.constant 0 : i32
    return %c0_i32, %c0_i32_0 : i32, i32
  }
  func.func @transform_2(%arg0: i32) -> (i32, i32) {
    %c0_i32 = arith.constant 0 : i32
    %c0_i32_0 = arith.constant 0 : i32
    %c0_i32_1 = arith.constant 0 : i32
    return %c0_i32, %c0_i32_0 : i32, i32
  }
  func.func @transform_3(%arg0: i32) -> (i32, i32) {
    %c0_i32 = arith.constant 0 : i32
    %c0_i32_0 = arith.constant 0 : i32
    %c0_i32_1 = arith.constant 0 : i32
    return %c0_i32, %c0_i32_0 : i32, i32
  }
  func.func @transform_4(%arg0: i32) -> (i32, i32) {
    %c0_i32 = arith.constant 0 : i32
    %c0_i32_0 = arith.constant 0 : i32
    %c0_i32_1 = arith.constant 0 : i32
    return %c0_i32, %c0_i32_0 : i32, i32
  }
  func.func @transform_5(%arg0: i32) -> (i32, i32) {
    %c0_i32 = arith.constant 0 : i32
    %c0_i32_0 = arith.constant 0 : i32
    %c0_i32_1 = arith.constant 0 : i32
    return %c0_i32, %c0_i32_0 : i32, i32
  }
  func.func @transform_6(%arg0: i32) -> (i32, i32) {
    %c0_i32 = arith.constant 0 : i32
    %c0_i32_0 = arith.constant 0 : i32
    %c0_i32_1 = arith.constant 0 : i32
    return %c0_i32, %c0_i32_0 : i32, i32
  }
  func.func @transform_7(%arg0: i32) -> (i32, i32) {
    %c0_i32 = arith.constant 0 : i32
    %c0_i32_0 = arith.constant 0 : i32
    return %c0_i32, %arg0 : i32, i32
  }
}

</mosaic_0001>

<llo_original>
// kernel: tpu_custom_call.1
$region0: #{tpu_custom_call.1}
  #allocation0 [shape = 'u32[]', space=smem, size = 0x4, offset = 0x4, fixed_abs, tag = 'smem constant byte address 0x4 - core index']
  #allocation1 [shape = 'u32[144,128]{1,0:T(1,128)}', space=vmem, size = 0x12000, scoped, tag = 'internal scratch']
  #allocation2 [shape = 'f32[1,1]{1,0:T(1,128)S(1)}', space=vmem, size = 0x200, scoped, tag = 'scoped memory for tpu_custom_call.1']
  %s0 = inlined_call_operand.vmem [shape: f32[2,128], index: 0, kind: input, shape index: {}]
  %s1 = inlined_call_operand.vmem [shape: f32[32,2], index: 1, kind: input, shape index: {}]
  %s2 = inlined_call_operand.vmem [shape: f32[32,1], index: 2, kind: input, shape index: {}]
  %s3 = inlined_call_operand.vmem [shape: f32[32,32], index: 3, kind: input, shape index: {}]
  %s4 = inlined_call_operand.vmem [shape: f32[32,1], index: 4, kind: input, shape index: {}]
  %s5 = inlined_call_operand.vmem [shape: f32[1,32], index: 5, kind: input, shape index: {}]
  %s6 = inlined_call_operand.<no memory space> [shape: f32[1,1], index: 6, kind: input, shape index: {}]
  %s7 = inlined_call_operand.hbm [shape: f32[1,128], index: 7, kind: output, shape index: {}]
  %s8 = sld [smem:[#allocation0]]
  $region38: #{tpu_custom_call.1} parent=0
    _
  %s10 = ssub.s32 1, %s8
  %s11 = scalar_select 0, %s10, %s8
  %v12 = vstv %s6
  %13 = vst [vmem:[#allocation2] sm:$0x1] %v12
  $region1: #{tpu_custom_call.1} parent=0
    #allocation3 [shape = 'u8[512]{0}', space=vmem, size = 0x400, scoped, tag = 'output window, operand 0, single buffered']
    #allocation4 [shape = 's32[1]{0}', space=sflag, size = 0x4, scoped, tag = 'scoped memory for tpu_custom_call.1']
    %14 = vsyncpa [#allocation4], 0
    // Predicated region
    $region2: #{tpu_custom_call.1} parent=1 // pred_check
      _
    $region3: #{tpu_custom_call.1} parent=1 // pred_check_branch
      %16 = sbr.rel (0) target = $region5
    $region4: #{tpu_custom_call.1} parent=1 // pred_region
      _
    $region5: #{tpu_custom_call.1} parent=1 // pred_fallthru
      _
    // Predicated region
    $region6: #{tpu_custom_call.1} parent=1 // pred_check
      _
    $region7: #{tpu_custom_call.1} parent=1 // pred_check_branch
      %18 = sbr.rel (0) target = $region9
    $region8: #{tpu_custom_call.1} parent=1 // pred_region
      _
    $region9: #{tpu_custom_call.1} parent=1 // pred_fallthru
      _
    // Predicated region
    $region10: #{tpu_custom_call.1} parent=1 // pred_check
      _
    $region11: #{tpu_custom_call.1} parent=1 // pred_check_branch
      %20 = sbr.rel (0) target = $region13
    $region12: #{tpu_custom_call.1} parent=1 // pred_region
      _
    $region13: #{tpu_custom_call.1} parent=1 // pred_fallthru
      _
    // Predicated region
    $region14: #{tpu_custom_call.1} parent=1 // pred_check
      _
    $region15: #{tpu_custom_call.1} parent=1 // pred_check_branch
      %22 = sbr.rel (0) target = $region17
    $region16: #{tpu_custom_call.1} parent=1 // pred_region
      _
    $region17: #{tpu_custom_call.1} parent=1 // pred_fallthru
      _
    // Predicated region
    $region18: #{tpu_custom_call.1} parent=1 // pred_check
      _
    $region19: #{tpu_custom_call.1} parent=1 // pred_check_branch
      %24 = sbr.rel (0) target = $region21
    $region20: #{tpu_custom_call.1} parent=1 // pred_region
      _
    $region21: #{tpu_custom_call.1} parent=1 // pred_fallthru
      _
    // Predicated region
    $region22: #{tpu_custom_call.1} parent=1 // pred_check
      _
    $region23: #{tpu_custom_call.1} parent=1 // pred_check_branch
      %26 = sbr.rel (0) target = $region25
    $region24: #{tpu_custom_call.1} parent=1 // pred_region
      _
    $region25: #{tpu_custom_call.1} parent=1 // pred_fallthru
      _
    // Predicated region
    $region26: #{tpu_custom_call.1} parent=1 // pred_check
      _
    $region27: #{tpu_custom_call.1} parent=1 // pred_check_branch
      %28 = sbr.rel (0) target = $region29
    $region28: #{tpu_custom_call.1} parent=1 // pred_region
      _
    $region29: #{tpu_custom_call.1} parent=1 // pred_fallthru
      _
    %v29 = vld [vmem:[%s0] sm:$0x3]
    %v30 = vld [vmem:[%s1] sm:$0xff]
    %v31 = vld [vmem:[%s1 + $0x8] sm:$0xff]
    %v32 = vld [vmem:[%s1 + $0x10] sm:$0xff]
    %v33 = vld [vmem:[%s1 + $0x18] sm:$0xff]
    %35 = vset.pattern.permute.xlu0 0
    %36 = vperm.xlu0 %35, %v30
    %v37 = vpop.permute.xlu0 %36
    %40 = vset.pattern.permute.xlu0 0
    %41 = vperm.xlu0 %40, %v31
    %v42 = vpop.permute.xlu0 %41
    %45 = vset.pattern.permute.xlu0 0
    %46 = vperm.xlu0 %45, %v32
    %v47 = vpop.permute.xlu0 %46
    %50 = vset.pattern.permute.xlu0 0
    %51 = vperm.xlu0 %50, %v33
    %v52 = vpop.permute.xlu0 %51
    %v54 = vlaneseq
    %v55 = vshrl.u32 %v54, 7
    %v56 = vsub.s32 0, %v55
    %v57 = vrot.slane %v29, %v56
    %v58 = vmul.f32 %v37, %v57
    %v59 = vmul.f32 %v42, %v57
    %v60 = vmul.f32 %v47, %v57
    %v61 = vmul.f32 %v52, %v57
    %62 = vset.pattern.permute.xlu0 1
    %63 = vperm.xlu0 %62, %v30
    %v64 = vpop.permute.xlu0 %63
    %66 = vset.pattern.permute.xlu0 1
    %67 = vperm.xlu0 %66, %v31
    %v68 = vpop.permute.xlu0 %67
    %70 = vset.pattern.permute.xlu0 1
    %71 = vperm.xlu0 %70, %v32
    %v72 = vpop.permute.xlu0 %71
    %74 = vset.pattern.permute.xlu0 1
    %75 = vperm.xlu0 %74, %v33
    %v76 = vpop.permute.xlu0 %75
    %v78 = vlaneseq
    %v79 = vshrl.u32 %v78, 7
    %v80 = vsub.s32 1, %v79
    %v81 = vrot.slane %v29, %v80
    %v82 = vmul.f32 %v64, %v81
    %v83 = vmul.f32 %v68, %v81
    %v84 = vmul.f32 %v72, %v81
    %v85 = vmul.f32 %v76, %v81
    %v86 = vadd.f32 %v58, %v82
    %v87 = vadd.f32 %v59, %v83
    %v88 = vadd.f32 %v60, %v84
    %v89 = vadd.f32 %v61, %v85
    %v90 = vld [vmem:[%s2] sm:$0xff]
    %v91 = vld [vmem:[%s2 + $0x8] sm:$0xff]
    %v92 = vld [vmem:[%s2 + $0x10] sm:$0xff]
    %v93 = vld [vmem:[%s2 + $0x18] sm:$0xff]
    %95 = vset.pattern.permute.xlu0 0
    %96 = vperm.xlu0 %95, %v90
    %v97 = vpop.permute.xlu0 %96
    %100 = vset.pattern.permute.xlu0 0
    %101 = vperm.xlu0 %100, %v91
    %v102 = vpop.permute.xlu0 %101
    %105 = vset.pattern.permute.xlu0 0
    %106 = vperm.xlu0 %105, %v92
    %v107 = vpop.permute.xlu0 %106
    %110 = vset.pattern.permute.xlu0 0
    %111 = vperm.xlu0 %110, %v93
    %v112 = vpop.permute.xlu0 %111
    %v114 = vadd.f32 %v86, %v97
    %v115 = vadd.f32 %v87, %v102
    %v116 = vadd.f32 %v88, %v107
    %v117 = vadd.f32 %v89, %v112
    %v118 = vtanh.pop %v114
    %v119 = vtanh.pop %v115
    %v120 = vtanh.pop %v116
    %v121 = vtanh.pop %v117
    %v122 = vld [vmem:[%s3] sm:$0xff]
    %v123 = vld [vmem:[%s3 + $0x8] sm:$0xff]
    %v124 = vld [vmem:[%s3 + $0x10] sm:$0xff]
    %v125 = vld [vmem:[%s3 + $0x18] sm:$0xff]
    %v126 = vld [vmem:[%s4] sm:$0xff]
    %v127 = vld [vmem:[%s4 + $0x8] sm:$0xff]
    %v128 = vld [vmem:[%s4 + $0x10] sm:$0xff]
    %v129 = vld [vmem:[%s4 + $0x18] sm:$0xff]
    %131 = vset.pattern.permute.xlu0 0
    %132 = vperm.xlu0 %131, %v126
    %v133 = vpop.permute.xlu0 %132
    %136 = vset.pattern.permute.xlu0 0
    %137 = vperm.xlu0 %136, %v127
    %v138 = vpop.permute.xlu0 %137
    %141 = vset.pattern.permute.xlu0 0
    %142 = vperm.xlu0 %141, %v128
    %v143 = vpop.permute.xlu0 %142
    %146 = vset.pattern.permute.xlu0 0
    %147 = vperm.xlu0 %146, %v129
    %v148 = vpop.permute.xlu0 %147
    %vm150 = vcmask 261120
    %v152 = vsel %vm150, %v122, 0
    %v155 = vsel %vm150, %v123, 0
    %v158 = vsel %vm150, %v124, 0
    %v161 = vsel %vm150, %v125, 0
    %163 = vmatprep.subr.mxu0 0.0
    %164 = vmatpush1.msra.mxu0 %v118
    %165 = vmatprep.subr.mxu0 0.0
    %166 = vmatpush1.msra.mxu0 %v119
    %167 = vmatprep.subr.mxu0 0.0
    %168 = vmatpush1.msra.mxu0 %v120
    %169 = vmatprep.subr.mxu0 0.0
    %170 = vmatpush1.msra.mxu0 %v121
    %171 = vmatprep.subr.mxu0 0.0
    %172 = vmatpush1.msra.mxu0 0.0
    %173 = vmatprep.subr.mxu0 0.0
    %174 = vmatpush1.msra.mxu0 0.0
    %175 = vmatprep.subr.mxu0 0.0
    %176 = vmatpush1.msra.mxu0 0.0
    %177 = vmatprep.subr.mxu0 0.0
    %178 = vmatpush1.msra.mxu0 0.0
    %179 = vmatprep.subr.mxu0 0.0
    %180 = vmatpush1.msra.mxu0 0.0
    %181 = vmatprep.subr.mxu0 0.0
    %182 = vmatpush1.msra.mxu0 0.0
    %183 = vmatprep.subr.mxu0 0.0
    %184 = vmatpush1.msra.mxu0 0.0
    %185 = vmatprep.subr.mxu0 0.0
    %186 = vmatpush1.msra.mxu0 0.0
    %187 = vmatprep.subr.mxu0 0.0
    %188 = vmatpush1.msra.mxu0 0.0
    %189 = vmatprep.subr.mxu0 0.0
    %190 = vmatpush1.msra.mxu0 0.0
    %191 = vmatprep.subr.mxu0 0.0
    %192 = vmatpush1.msra.mxu0 0.0
    %193 = vmatprep.subr.mxu0 0.0
    %194 = vmatpush1.msra.mxu0 0.0
    %195 = vmatprep.subr.mxu0 0.0
    %196 = vmatpush1.msra.mxu0 0.0
    %197 = vmatprep.subr.mxu0 0.0
    %198 = vmatpush1.msra.mxu0 0.0
    %199 = vmatprep.subr.mxu0 0.0
    %200 = vmatpush1.msra.mxu0 0.0
    %201 = vmatprep.subr.mxu0 0.0
    %202 = vmatpush1.msra.mxu0 0.0
    %203 = vmatprep.subr.mxu0 0.0
    %204 = vmatpush1.msra.mxu0 0.0
    %205 = vmatprep.subr.mxu0 0.0
    %206 = vmatpush1.msra.mxu0 0.0
    %207 = vmatprep.subr.mxu0 0.0
    %208 = vmatpush1.msra.mxu0 0.0
    %209 = vmatprep.subr.mxu0 0.0
    %210 = vmatpush1.msra.mxu0 0.0
    %211 = vmatprep.subr.mxu0 0.0
    %212 = vmatpush1.msra.mxu0 0.0
    %213 = vmatprep.subr.mxu0 0.0
    %214 = vmatpush1.msra.mxu0 0.0
    %215 = vmatprep.subr.mxu0 0.0
    %216 = vmatpush1.msra.mxu0 0.0
    %217 = vmatprep.subr.mxu0 0.0
    %218 = vmatpush1.msra.mxu0 0.0
    %219 = vmatprep.subr.mxu0 0.0
    %220 = vmatpush1.msra.mxu0 0.0
    %221 = vmatprep.subr.mxu0 0.0
    %222 = vmatpush1.msra.mxu0 0.0
    %223 = vmatprep.subr.mxu0 0.0
    %224 = vmatpush1.msra.mxu0 0.0
    %225 = vmatprep.subr.mxu0 0.0
    %226 = vmatpush1.msra.mxu0 0.0
    %227 = vmatprep.mubr.f32.mxu0 0.0
    %228 = vmatmul.mubr.f32.gmra.mrb[0].mxu0 %v152
    %v229 = vpop.f32.mrb[0].mxu0
    %v230 = vadd.f32 %v133, %v229
    %v231 = vpop.f32.mrb[0].mxu0
    %232 = vmatprep.mubr.f32.mxu0 0.0
    %233 = vmatmul.mubr.f32.gmra.mrb[0].mxu0 %v155
    %v234 = vpop.f32.mrb[0].mxu0
    %v235 = vadd.f32 %v138, %v234
    %v236 = vpop.f32.mrb[0].mxu0
    %237 = vmatprep.mubr.f32.mxu0 0.0
    %238 = vmatmul.mubr.f32.gmra.mrb[0].mxu0 %v158
    %v239 = vpop.f32.mrb[0].mxu0
    %v240 = vadd.f32 %v143, %v239
    %v241 = vpop.f32.mrb[0].mxu0
    %242 = vmatprep.mubr.f32.mxu0 0.0
    %243 = vmatmul.mubr.f32.gmra.mrb[0].mxu0 %v161
    %v244 = vpop.f32.mrb[0].mxu0
    %v245 = vadd.f32 %v148, %v244
    %v246 = vpop.f32.mrb[0].mxu0
    %247 = vdwg.mxu0
    %v248 = vtanh.pop %v230
    %v249 = vtanh.pop %v235
    %v250 = vtanh.pop %v240
    %v251 = vtanh.pop %v245
    %v252 = vld [vmem:[%s5] sm:$0x1]
    %v253 = vld [vmem:[#allocation2] sm:$0x1]
    %255 = vset.pattern.permute.xlu0 0
    %256 = vperm.xlu0 %255, %v253
    %v257 = vpop.permute.xlu0 %256
    %v259 = vlaneseq
    %v260 = vshrl.u32 %v259, 7
    %v261 = vsub.s32 0, %v260
    %v262 = vrot.slane %v257, %v261
    %v264 = vsel %vm150, %v252, 0
    %266 = vmatprep.subr.mxu0 0.0
    %267 = vmatpush1.msra.mxu0 %v248
    %268 = vmatprep.subr.mxu0 0.0
    %269 = vmatpush1.msra.mxu0 %v249
    %270 = vmatprep.subr.mxu0 0.0
    %271 = vmatpush1.msra.mxu0 %v250
    %272 = vmatprep.subr.mxu0 0.0
    %273 = vmatpush1.msra.mxu0 %v251
    %274 = vmatprep.subr.mxu0 0.0
    %275 = vmatpush1.msra.mxu0 0.0
    %276 = vmatprep.subr.mxu0 0.0
    %277 = vmatpush1.msra.mxu0 0.0
    %278 = vmatprep.subr.mxu0 0.0
    %279 = vmatpush1.msra.mxu0 0.0
    %280 = vmatprep.subr.mxu0 0.0
    %281 = vmatpush1.msra.mxu0 0.0
    %282 = vmatprep.subr.mxu0 0.0
    %283 = vmatpush1.msra.mxu0 0.0
    %284 = vmatprep.subr.mxu0 0.0
    %285 = vmatpush1.msra.mxu0 0.0
    %286 = vmatprep.subr.mxu0 0.0
    %287 = vmatpush1.msra.mxu0 0.0
    %288 = vmatprep.subr.mxu0 0.0
    %289 = vmatpush1.msra.mxu0 0.0
    %290 = vmatprep.subr.mxu0 0.0
    %291 = vmatpush1.msra.mxu0 0.0
    %292 = vmatprep.subr.mxu0 0.0
    %293 = vmatpush1.msra.mxu0 0.0
    %294 = vmatprep.subr.mxu0 0.0
    %295 = vmatpush1.msra.mxu0 0.0
    %296 = vmatprep.subr.mxu0 0.0
    %297 = vmatpush1.msra.mxu0 0.0
    %298 = vmatprep.subr.mxu0 0.0
    %299 = vmatpush1.msra.mxu0 0.0
    %300 = vmatprep.subr.mxu0 0.0
    %301 = vmatpush1.msra.mxu0 0.0
    %302 = vmatprep.subr.mxu0 0.0
    %303 = vmatpush1.msra.mxu0 0.0
    %304 = vmatprep.subr.mxu0 0.0
    %305 = vmatpush1.msra.mxu0 0.0
    %306 = vmatprep.subr.mxu0 0.0
    %307 = vmatpush1.msra.mxu0 0.0
    %308 = vmatprep.subr.mxu0 0.0
    %309 = vmatpush1.msra.mxu0 0.0
    %310 = vmatprep.subr.mxu0 0.0
    %311 = vmatpush1.msra.mxu0 0.0
    %312 = vmatprep.subr.mxu0 0.0
    %313 = vmatpush1.msra.mxu0 0.0
    %314 = vmatprep.subr.mxu0 0.0
    %315 = vmatpush1.msra.mxu0 0.0
    %316 = vmatprep.subr.mxu0 0.0
    %317 = vmatpush1.msra.mxu0 0.0
    %318 = vmatprep.subr.mxu0 0.0
    %319 = vmatpush1.msra.mxu0 0.0
    %320 = vmatprep.subr.mxu0 0.0
    %321 = vmatpush1.msra.mxu0 0.0
    %322 = vmatprep.subr.mxu0 0.0
    %323 = vmatpush1.msra.mxu0 0.0
    %324 = vmatprep.subr.mxu0 0.0
    %325 = vmatpush1.msra.mxu0 0.0
    %326 = vmatprep.subr.mxu0 0.0
    %327 = vmatpush1.msra.mxu0 0.0
    %328 = vmatprep.subr.mxu0 0.0
    %329 = vmatpush1.msra.mxu0 0.0
    %330 = vmatprep.mubr.f32.mxu0 0.0
    %331 = vmatmul.mubr.f32.gmra.mrb[0].mxu0 %v264
    %v332 = vpop.f32.mrb[0].mxu0
    %v333 = vadd.f32 %v262, %v332
    %v334 = vpop.f32.mrb[0].mxu0
    %335 = vdwg.mxu0
    %336 = vst [vmem:[#allocation3] sm:$0x1] %v333
    // Predicated region
    $region30: #{tpu_custom_call.1} parent=1 // pred_check
      _
    $region31: #{tpu_custom_call.1} parent=1 // pred_check_branch
      %338 = sbr.rel (0) target = $region33
    $region32: #{tpu_custom_call.1} parent=1 // pred_region
      %s340 = ssub.s32 16, 16
      %341 = vsyncadd [#allocation4], %s340
      %s343 = sshll.u32 [#allocation3], 4
      %s344 = int_to_ptr.vmem [resolvable:$true] %s343
      %346 = dma.vmem_to_hbm [thread:$0]  %s344, 16, %s7, [#allocation4]
    $region33: #{tpu_custom_call.1} parent=1 // pred_fallthru
      _
    // Predicated region
    $region34: #{tpu_custom_call.1} parent=1 // pred_check
      _
    $region35: #{tpu_custom_call.1} parent=1 // pred_check_branch
      %348 = sbr.rel (0) target = $region37
    $region36: #{tpu_custom_call.1} parent=1 // pred_region
      %349 = dma.done [#allocation4], 16
    $region37: #{tpu_custom_call.1} parent=1 // pred_fallthru
      _
    %350 = vsyncpa [#allocation4], 1

</llo_original>
